<compile_context>
chip_gen: v6e
topology: v6e:2x2x1
jax: 0.10.0
libtpu: 0.0.40
codegen_flags: <defaults>
</compile_context>

<pallas_src>
import math

import jax
import jax.numpy as jnp
from jax.experimental import pallas as pl
from jax.experimental.pallas import tpu as pltpu


def _round_up(x, m):
    return ((x + m - 1) // m) * m


def _pad2d(x, rows, cols):
    pr, pc = rows - x.shape[0], cols - x.shape[1]
    if pr or pc:
        x = jnp.pad(x, ((0, pr), (0, pc)))
    return x


def _matmul_kernel(a_ref, b_ref, o_ref, acc_ref):
    """o[i,j] = sum_k a[i,k] @ b[k,j]; K-tiled with f32 accumulator scratch."""
    @pl.when(pl.program_id(2) == 0)
    def _():
        acc_ref[...] = jnp.zeros_like(acc_ref)

    acc_ref[...] += jnp.dot(
        a_ref[...], b_ref[...], preferred_element_type=jnp.float32
    )

    @pl.when(pl.program_id(2) == pl.num_programs(2) - 1)
    def _():
        o_ref[...] = acc_ref[...].astype(o_ref.dtype)


def _tiled_matmul(a, b, tm, tn, tk, vmem_limit_bytes=None):
    """C = A @ B for pre-padded A:[M,K], B:[K,N] with M%tm==K%tk==N%tn==0."""
    M, K = a.shape
    K2, N = b.shape
    assert K == K2 and M % tm == 0 and K % tk == 0 and N % tn == 0

    grid = (M // tm, N // tn, K // tk)
    return pl.pallas_call(
        _matmul_kernel,
        out_shape=jax.ShapeDtypeStruct((M, N), jnp.float32),
        grid_spec=pltpu.PrefetchScalarGridSpec(
            num_scalar_prefetch=0,
            grid=grid,
            in_specs=[
                pl.BlockSpec((tm, tk), lambda i, j, k: (i, k)),
                pl.BlockSpec((tk, tn), lambda i, j, k: (k, j)),
            ],
            out_specs=pl.BlockSpec((tm, tn), lambda i, j, k: (i, j)),
            scratch_shapes=[pltpu.VMEM((tm, tn), jnp.float32)],
        ),
        compiler_params=pltpu.CompilerParams(
            # Reduction axis last; independent row/col axes parallel (megacore).
            dimension_semantics=("parallel", "parallel", "arbitrary"),
            vmem_limit_bytes=vmem_limit_bytes,
        ),
    )(a, b)


def graph_convolution_forward(x, adj, weight, bias=None, *,
                              block_rows=256, block_k=256,
                              vmem_limit_bytes=None):
    """output = adj @ (x @ weight) [+ bias]   (GraphConvolution.forward)."""
    N, f_in = x.shape
    f_in2, f_out = weight.shape
    assert f_in2 == f_in and adj.shape == (N, N)

    # Tile sizes: rows (sublane) multiple of 8, lane/contraction multiples of
    # 128, never larger than the padded operand dims.
    tm = min(_round_up(N, 8), _round_up(block_rows, 8))
    tk_adj = min(_round_up(N, 128), _round_up(block_k, 128))   # contraction over N
    tk_w = min(_round_up(f_in, 128), _round_up(block_k, 128))  # contraction over f_in
    tn = min(_round_up(f_out, 128), 128)                       # lane-dense output tile

    # N is both the row dim (tile tm) and the contraction dim of adj @ support
    # (tile tk_adj): pad it to a common multiple of both.
    n_pad = _round_up(N, math.lcm(tm, tk_adj))
    fi_pad = _round_up(f_in, tk_w)
    fo_pad = _round_up(f_out, tn)

    x_p = _pad2d(x.astype(jnp.float32), n_pad, fi_pad)
    w_p = _pad2d(weight.astype(jnp.float32), fi_pad, fo_pad)
    adj_p = _pad2d(adj.astype(jnp.float32), n_pad, n_pad)

    # Stage 1 (hoisted out of the adjacency loop): support = X @ W.
    support_p = _tiled_matmul(x_p, w_p, tm, tn, tk_w, vmem_limit_bytes)
    # Stage 2 (heavy, HBM-bound pass): output = adj @ support, K-tiled over N.
    out_p = _tiled_matmul(adj_p, support_p, tm, tn, tk_adj, vmem_limit_bytes)

    out = out_p[:N, :f_out]
    if bias is not None:
        out = out + bias
    return out


if __name__ == "__main__":
    # Small, module-consistent shapes: N nodes, in_features -> out_features.
    N, in_features, out_features = 64, 32, 16

    key = jax.random.PRNGKey(0)
    k_x, k_adj, k_w = jax.random.split(key, 3)

    # Xavier-uniform init for the weight (matches reset_parameters).
    bound = math.sqrt(6.0 / (in_features + out_features))
    weight = jax.random.uniform(
        k_w, (in_features, out_features), jnp.float32, minval=-bound, maxval=bound
    )

    # Node features and a (dense-materialized) normalized adjacency.
    x = jax.random.normal(k_x, (N, in_features), jnp.float32)
    adj_raw = (jax.random.uniform(k_adj, (N, N)) < 0.2).astype(jnp.float32)
    adj = adj_raw + jnp.eye(N, dtype=jnp.float32)            # add self-loops
    adj = adj / jnp.maximum(adj.sum(axis=1, keepdims=True), 1.0)

    out = graph_convolution_forward(x, adj, weight)
    out = jax.block_until_ready(out)

    # Reference check in plain JAX.
    ref = adj @ (x @ weight)
    assert out.shape == (N, out_features)
    assert jnp.allclose(out, ref, atol=1e-5, rtol=1e-5)

    print("KERNEL_OK")
</pallas_src>

<mosaic_0001>
module attributes {stable_mosaic.version = 11 : i64} {
  func.func @_matmul_kernel(%arg0: i32, %arg1: i32, %arg2: i32, %arg3: memref<64x128xf32, #tpu.memory_space<vmem>>, %arg4: memref<128x128xf32, #tpu.memory_space<vmem>>, %arg5: memref<64x128xf32, #tpu.memory_space<vmem>>, %arg6: memref<64x128xf32, #tpu.memory_space<vmem>>) attributes {dimension_semantics = [#tpu.dimension_semantics<parallel>, #tpu.dimension_semantics<parallel>, #tpu.dimension_semantics<arbitrary>], iteration_bounds = array<i64: 2, 1, 1>, scalar_prefetch = 0 : i64, scratch_operands = 1 : i64, tpu.core_type = #tpu.core_type<tc>, window_params = [{transform_indices = @transform_0, window_bounds = array<i64: 64, 128>}, {transform_indices = @transform_1, window_bounds = array<i64: 128, 128>}, {transform_indices = @transform_2, window_bounds = array<i64: 64, 128>}]} {
    %c0_i32 = arith.constant 0 : i32
    %0 = arith.cmpi eq, %arg2, %c0_i32 : i32
    %1 = arith.extui %0 : i1 to i32
    %c0_i32_0 = arith.constant 0 : i32
    %2 = arith.cmpi ne, %1, %c0_i32_0 : i32
    scf.if %2 {
      %cst_10 = arith.constant 0.000000e+00 : f32
      %12 = vector.broadcast %cst_10 : f32 to vector<64x128xf32>
      %c0_11 = arith.constant 0 : index
      %c0_12 = arith.constant 0 : index
      %13 = vector.load %arg6[%c0_11, %c0_12] : memref<64x128xf32, #tpu.memory_space<vmem>>, vector<64x128xf32>
      tpu.vector_store %arg6[%c0_11, %c0_12], %12 {strides = array<i32>} : memref<64x128xf32, #tpu.memory_space<vmem>>, vector<64x128xf32>,
    } else {
    }
    %c0 = arith.constant 0 : index
    %c0_1 = arith.constant 0 : index
    %3 = vector.load %arg6[%c0, %c0_1] : memref<64x128xf32, #tpu.memory_space<vmem>>, vector<64x128xf32>
    %c0_2 = arith.constant 0 : index
    %c0_3 = arith.constant 0 : index
    %4 = vector.load %arg3[%c0_2, %c0_3] : memref<64x128xf32, #tpu.memory_space<vmem>>, vector<64x128xf32>
    %c0_4 = arith.constant 0 : index
    %c0_5 = arith.constant 0 : index
    %5 = vector.load %arg4[%c0_4, %c0_5] : memref<128x128xf32, #tpu.memory_space<vmem>>, vector<128x128xf32>
    %cst = arith.constant dense<0.000000e+00> : vector<64x128xf32>
    %6 = tpu.matmul %4, %5, %cst {dimension_numbers = #tpu.dot_dimension_numbers<[1], [0], [0], [1], [0, 0, 1, 1], [], []>} : vector<64x128xf32>, vector<128x128xf32>, vector<64x128xf32> -> vector<64x128xf32>
    %7 = arith.addf %3, %6 : vector<64x128xf32>
    %c0_6 = arith.constant 0 : index
    %c0_7 = arith.constant 0 : index
    %8 = vector.load %arg6[%c0_6, %c0_7] : memref<64x128xf32, #tpu.memory_space<vmem>>, vector<64x128xf32>
    tpu.vector_store %arg6[%c0_6, %c0_7], %7 {strides = array<i32>} : memref<64x128xf32, #tpu.memory_space<vmem>>, vector<64x128xf32>,
    %c0_i32_8 = arith.constant 0 : i32
    %9 = arith.cmpi eq, %arg2, %c0_i32_8 : i32
    %10 = arith.extui %9 : i1 to i32
    %c0_i32_9 = arith.constant 0 : i32
    %11 = arith.cmpi ne, %10, %c0_i32_9 : i32
    scf.if %11 {
      %c0_10 = arith.constant 0 : index
      %c0_11 = arith.constant 0 : index
      %12 = vector.load %arg6[%c0_10, %c0_11] : memref<64x128xf32, #tpu.memory_space<vmem>>, vector<64x128xf32>
      %c0_12 = arith.constant 0 : index
      %c0_13 = arith.constant 0 : index
      %13 = vector.load %arg5[%c0_12, %c0_13] : memref<64x128xf32, #tpu.memory_space<vmem>>, vector<64x128xf32>
      tpu.vector_store %arg5[%c0_12, %c0_13], %12 {strides = array<i32>} : memref<64x128xf32, #tpu.memory_space<vmem>>, vector<64x128xf32>,
    } else {
    }
    return
  }
  func.func @transform_0(%arg0: i32, %arg1: i32, %arg2: i32) -> (i32, i32) {
    %c0_i32 = arith.constant 0 : i32
    return %arg0, %arg2 : i32, i32
  }
  func.func @transform_1(%arg0: i32, %arg1: i32, %arg2: i32) -> (i32, i32) {
    %c0_i32 = arith.constant 0 : i32
    return %arg2, %arg1 : i32, i32
  }
  func.func @transform_2(%arg0: i32, %arg1: i32, %arg2: i32) -> (i32, i32) {
    %c0_i32 = arith.constant 0 : i32
    return %arg0, %arg1 : i32, i32
  }
}

</mosaic_0001>

<llo_original>
// kernel: tpu_custom_call.1
$region0: #{tpu_custom_call.1}
  #allocation0 [shape = 'u32[]', space=smem, size = 0x4, offset = 0x4, fixed_abs, tag = 'smem constant byte address 0x4 - core index']
  #allocation1 [shape = 'u32[144,128]{1,0:T(1,128)}', space=vmem, size = 0x12000, scoped, tag = 'internal scratch']
  #allocation2 [shape = 'f32[64,128]{1,0:T(8,128)}', space=vmem, size = 0x8000, scoped, tag = 'scratch operand']
  %s0 = inlined_call_operand.hbm [shape: f32[128,128], index: 0, kind: input, shape index: {}]
  %s1 = inlined_call_operand.hbm [shape: f32[128,128], index: 1, kind: input, shape index: {}]
  %s2 = inlined_call_operand.hbm [shape: f32[128,128], index: 2, kind: output, shape index: {}]
  %s3 = sld [smem:[#allocation0]]
  $region57: #{tpu_custom_call.1} parent=0
    _
  %s5 = ssub.s32 1, %s3
  %s6 = scalar_select 0, %s5, %s3
  $region1: #{tpu_custom_call.1} parent=0
    #allocation3 [shape = 'u8[65536]{0}', space=vmem, size = 0x10000, scoped, tag = 'input window, operand 0']
    #allocation4 [shape = 's32[2]{0}', space=sflag, size = 0x8, scoped, tag = 'scoped memory for tpu_custom_call.1']
    #allocation5 [shape = 's32[2]{0}', space=sflag, size = 0x8, scoped, tag = 'scoped memory for tpu_custom_call.1']
    #allocation6 [shape = 'u8[65536]{0}', space=vmem, size = 0x10000, scoped, tag = 'input window, operand 1, single buffered']
    #allocation7 [shape = 's32[1]{0}', space=sflag, size = 0x4, scoped, tag = 'scoped memory for tpu_custom_call.1']
    #allocation8 [shape = 'u8[65536]{0}', space=vmem, size = 0x10000, scoped, tag = 'output window, operand 0']
    %7 = vsyncpa [#allocation4], 0
    %s8 = scalar_lea.sflag [#allocation4], 1
    %9 = vsyncpa %s8, 0
    %10 = vsyncpa [#allocation7], 0
    %11 = vsyncpa [#allocation5], 0
    %s12 = scalar_lea.sflag [#allocation5], 1
    %13 = vsyncpa %s12, 0
    loop: start=0, step=1, limit=4
    $region2: #{tpu_custom_call.1} parent=1 // loop_pre_header
      _
    $region3: #{tpu_custom_call.1} parent=1 // loop_header
      %s15 = sphi 0, %s19
      %p16 = scmp.ge.s32.totalorder %s15, 4
      %s22 = sphi 0, %s41
      %s23 = sphi 0, %s37
      %s24 = sphi 0, %s33
      %s25 = sphi 0, %s22
      %s26 = sphi 0, %s23
      %s27 = sphi 0, %s24
      %s28 = sphi 0, %s25
      %s29 = sphi 0, %s26
      %s30 = sphi 0, %s27
      %s46 = sphi 0, %s48
      %s49 = sphi 0, %s46
      %s50 = sphi 0, %s49
      %s66 = sphi 0, %s50
      %s74 = sphi 0, %s76
      %s77 = sphi 0, %s74
      %s78 = sphi 0, %s77
      %s94 = sphi 0, %s78
      %s102 = sphi 0, %s104
      %s105 = sphi 0, %s102
      %s106 = sphi 0, %s105
      %s122 = sphi 0, %s106
    $region4: #{tpu_custom_call.1} parent=1 // loop_header_branch
      %18 = sbr.rel (%p16) target = $region8
    $region5: #{tpu_custom_call.1} parent=1 // loop_body
      %s20 = ssub.s32 %s15, 1
      %s21 = ssub.s32 %s15, 2
      %s31 = sadd.s32 1, %s24
      %p32 = scmp.ge.s32.totalorder %s31, 1
      %s33 = scalar_select %p32, 0, %s31
      %s34 = sadd.s32 1, %s23
      %s35 = scalar_select %p32, %s34, %s23
      %p36 = scmp.ge.s32.totalorder %s35, 1
      %s37 = scalar_select %p36, 0, %s35
      %s38 = sadd.s32 1, %s22
      %s39 = scalar_select %p36, %s38, %s22
      %p40 = scmp.ge.s32.totalorder %s39, 2
      %s41 = scalar_select %p40, 0, %s39
      %s42 = ssub.s32 %s22, %s41
      %s43 = ssub.s32 %s24, %s33
      %s44 = sor.u32 %s42, %s43
      %p45 = scmp.eq.s32.totalorder %s44, 0
      %s47 = sadd.s32 %s46, 1
      %s48 = scalar_select %p45, %s46, %s47
      %p51 = pneg %p45
      %p52 = scmp.eq.s32.totalorder %s15, 1
      %p53 = por %p51, %p52
      %p54 = scmp.ne.s32.totalorder %s46, %s49
      %p55 = scmp.eq.s32.totalorder %s15, 0
      %p56 = por %p54, %p55
      %p57 = scmp.ne.s32.totalorder %s46, %s49
      %p58 = scmp.eq.s32.totalorder %s20, 1
      %p59 = por %p57, %p58
      %p60 = scmp.ne.s32.totalorder %s49, %s50
      %p61 = scmp.eq.s32.totalorder %s20, 0
      %p62 = por %p60, %p61
      %p63 = scmp.ne.s32.totalorder %s49, %s50
      %p64 = scmp.eq.s32.totalorder %s21, 1
      %p65 = por %p63, %p64
      %p67 = scmp.ne.s32.totalorder %s50, %s66
      %p68 = scmp.eq.s32.totalorder %s21, 0
      %p69 = por %p67, %p68
      %s70 = ssub.s32 %s24, %s33
      %s71 = ssub.s32 %s23, %s37
      %s72 = sor.u32 %s70, %s71
      %p73 = scmp.eq.s32.totalorder %s72, 0
      %s75 = sadd.s32 %s74, 1
      %s76 = scalar_select %p73, %s74, %s75
      %p79 = pneg %p73
      %p80 = scmp.eq.s32.totalorder %s15, 1
      %p81 = por %p79, %p80
      %p82 = scmp.ne.s32.totalorder %s74, %s77
      %p83 = scmp.eq.s32.totalorder %s15, 0
      %p84 = por %p82, %p83
      %p85 = scmp.ne.s32.totalorder %s74, %s77
      %p86 = scmp.eq.s32.totalorder %s20, 1
      %p87 = por %p85, %p86
      %p88 = scmp.ne.s32.totalorder %s77, %s78
      %p89 = scmp.eq.s32.totalorder %s20, 0
      %p90 = por %p88, %p89
      %p91 = scmp.ne.s32.totalorder %s77, %s78
      %p92 = scmp.eq.s32.totalorder %s21, 1
      %p93 = por %p91, %p92
      %p95 = scmp.ne.s32.totalorder %s78, %s94
      %p96 = scmp.eq.s32.totalorder %s21, 0
      %p97 = por %p95, %p96
      %s98 = ssub.s32 %s22, %s41
      %s99 = ssub.s32 %s23, %s37
      %s100 = sor.u32 %s98, %s99
      %p101 = scmp.eq.s32.totalorder %s100, 0
      %s103 = sadd.s32 %s102, 1
      %s104 = scalar_select %p101, %s102, %s103
      %p107 = pneg %p101
      %p108 = scmp.eq.s32.totalorder %s15, 1
      %p109 = por %p107, %p108
      %p110 = scmp.ne.s32.totalorder %s102, %s105
      %p111 = scmp.eq.s32.totalorder %s15, 0
      %p112 = por %p110, %p111
      %p113 = scmp.ne.s32.totalorder %s102, %s105
      %p114 = scmp.eq.s32.totalorder %s20, 1
      %p115 = por %p113, %p114
      %p116 = scmp.ne.s32.totalorder %s105, %s106
      %p117 = scmp.eq.s32.totalorder %s20, 0
      %p118 = por %p116, %p117
      %p119 = scmp.ne.s32.totalorder %s105, %s106
      %p120 = scmp.eq.s32.totalorder %s21, 1
      %p121 = por %p119, %p120
      %p123 = scmp.ne.s32.totalorder %s106, %s122
      %p124 = scmp.eq.s32.totalorder %s21, 0
      %p125 = por %p123, %p124
      %p126 = scmp.le.s32.totalorder 1, %s15
      %p127 = scmp.lt.s32.totalorder %s15, 3
      %p128 = pnand %p126, %p127
      %p129 = pneg %p128
      // Predicated region
      $region9: #{tpu_custom_call.1} parent=5 // pred_check
        _
      $region10: #{tpu_custom_call.1} parent=5 // pred_check_branch
        %131 = sbr.rel (%p128) target = $region12
      $region11: #{tpu_custom_call.1} parent=5 // pred_region
        %s132 = ssub.s32 %s15, 1
        // Predicated region
        $region13: #{tpu_custom_call.1} parent=11 // pred_check
          %p133 = pneg %p90
        $region14: #{tpu_custom_call.1} parent=11 // pred_check_branch
          %135 = sbr.rel (%p133) target = $region16
        $region15: #{tpu_custom_call.1} parent=11 // pred_region
          %s136 = smul.u32 16, %s27
          %s138 = ssub.s32 2048, 2048
          %139 = vsyncadd [#allocation7], %s138
          %s140 = sadd.s32 %s26, %s136
          %s141 = smul.addr %s140, 128
          %s142 = scalar_lea.hbm %s1, %s141
          %s143 = sshll.u32 [#allocation6], 4
          %s144 = int_to_ptr.vmem [resolvable:$true] %s143
          %149 = dma.hbm_to_vmem [thread:$0]  %s142, 2048, %s144, [#allocation7], 128, 128, 8
        $region16: #{tpu_custom_call.1} parent=11 // pred_fallthru
          _
      $region12: #{tpu_custom_call.1} parent=5 // pred_fallthru
        _
      %p150 = scmp.lt.s32.totalorder %s15, 2
      // Predicated region
      $region17: #{tpu_custom_call.1} parent=5 // pred_check
        %p151 = pneg %p150
      $region18: #{tpu_custom_call.1} parent=5 // pred_check_branch
        %153 = sbr.rel (%p151) target = $region20
      $region19: #{tpu_custom_call.1} parent=5 // pred_region
        // Predicated region
        $region21: #{tpu_custom_call.1} parent=19 // pred_check
          %p154 = pneg %p56
        $region22: #{tpu_custom_call.1} parent=19 // pred_check_branch
          %156 = sbr.rel (%p154) target = $region24
        $region23: #{tpu_custom_call.1} parent=19 // pred_region
          %s157 = sand.u32 %s46, 1
          %s158 = scalar_lea.sflag [#allocation4], %s157
          %s159 = sand.u32 %s46, 1
          %s160 = smul.addr %s159, 64
          %s161 = scalar_lea.vmem [#allocation3], %s160
          %s162 = smul.u32 8, %s22
          %s164 = ssub.s32 1024, 1024
          %165 = vsyncadd %s158, %s164
          %s166 = sadd.s32 %s24, %s162
          %s167 = smul.addr %s166, 128
          %s168 = scalar_lea.hbm %s0, %s167
          %s169 = sshll.u32 %s161, 4
          %s170 = int_to_ptr.vmem [resolvable:$true] %s169
          %175 = dma.hbm_to_vmem [thread:$0]  %s168, 1024, %s170, %s158, 128, 128, 8
        $region24: #{tpu_custom_call.1} parent=19 // pred_fallthru
          _
      $region20: #{tpu_custom_call.1} parent=5 // pred_fallthru
        _
      %p176 = scmp.le.s32.totalorder 1, %s15
      %p177 = scmp.lt.s32.totalorder %s15, 3
      %p178 = pnand %p176, %p177
      %p179 = pneg %p178
      // Predicated region
      $region25: #{tpu_custom_call.1} parent=5 // pred_check
        _
      $region26: #{tpu_custom_call.1} parent=5 // pred_check_branch
        %181 = sbr.rel (%p178) target = $region28
      $region27: #{tpu_custom_call.1} parent=5 // pred_region
        %s182 = ssub.s32 %s15, 1
        %s183 = sand.u32 %s49, 1
        %s184 = scalar_lea.sflag [#allocation4], %s183
        %s185 = sand.u32 %s49, 1
        %s186 = smul.addr %s185, 64
        %s187 = scalar_lea.vmem [#allocation3], %s186
        // Predicated region
        $region29: #{tpu_custom_call.1} parent=27 // pred_check
          %p188 = pneg %p62
        $region30: #{tpu_custom_call.1} parent=27 // pred_check_branch
          %190 = sbr.rel (%p188) target = $region32
        $region31: #{tpu_custom_call.1} parent=27 // pred_region
          %191 = dma.done %s184, 1024
        $region32: #{tpu_custom_call.1} parent=27 // pred_fallthru
          _
        // Predicated region
        $region33: #{tpu_custom_call.1} parent=27 // pred_check
          %p192 = pneg %p90
        $region34: #{tpu_custom_call.1} parent=27 // pred_check_branch
          %194 = sbr.rel (%p192) target = $region36
        $region35: #{tpu_custom_call.1} parent=27 // pred_region
          %195 = dma.done [#allocation7], 2048
        $region36: #{tpu_custom_call.1} parent=27 // pred_fallthru
          _
        %s196 = sand.u32 %s49, 1
        %s197 = scalar_lea.sflag [#allocation4], %s196
        %s198 = sand.u32 %s49, 1
        %s199 = smul.addr %s198, 64
        %s200 = scalar_lea.vmem [#allocation3], %s199
        %p201 = pneg %p62
        %p202 = pneg %p59
        %p203 = pneg %p90
        %p204 = pneg %p87
        %p205 = pneg %p118
        %p206 = pneg %p115
        %s207 = sand.u32 %s105, 1
        %s208 = scalar_lea.sflag [#allocation5], %s207
        %s209 = sand.u32 %s105, 1
        %s210 = smul.addr %s209, 64
        %s211 = scalar_lea.vmem [#allocation8], %s210
        %s212 = smul.u32 8, %s25
        %s213 = smul.u32 16, %s27
        %s214 = smul.u32 8, %s25
        %p215 = scmp.eq.s32.totalorder %s27, 0
        // Predicated region
        $region37: #{tpu_custom_call.1} parent=27 // pred_check
          %p216 = pneg %p215
        $region38: #{tpu_custom_call.1} parent=27 // pred_check_branch
          %218 = sbr.rel (%p216) target = $region40
        $region39: #{tpu_custom_call.1} parent=27 // pred_region
          %219 = vst [vmem:[#allocation2] sm:$0xff] 0.0
          %220 = vst [vmem:[#allocation2 + $0x8] sm:$0xff] 0.0
          %221 = vst [vmem:[#allocation2 + $0x10] sm:$0xff] 0.0
          %222 = vst [vmem:[#allocation2 + $0x18] sm:$0xff] 0.0
          %223 = vst [vmem:[#allocation2 + $0x20] sm:$0xff] 0.0
          %224 = vst [vmem:[#allocation2 + $0x28] sm:$0xff] 0.0
          %225 = vst [vmem:[#allocation2 + $0x30] sm:$0xff] 0.0
          %226 = vst [vmem:[#allocation2 + $0x38] sm:$0xff] 0.0
        $region40: #{tpu_custom_call.1} parent=27 // pred_fallthru
          _
        %v227 = vld [vmem:[#allocation2] sm:$0xff]
        %v228 = vld [vmem:[#allocation2 + $0x8] sm:$0xff]
        %v229 = vld [vmem:[#allocation2 + $0x10] sm:$0xff]
        %v230 = vld [vmem:[#allocation2 + $0x18] sm:$0xff]
        %v231 = vld [vmem:[#allocation2 + $0x20] sm:$0xff]
        %v232 = vld [vmem:[#allocation2 + $0x28] sm:$0xff]
        %v233 = vld [vmem:[#allocation2 + $0x30] sm:$0xff]
        %v234 = vld [vmem:[#allocation2 + $0x38] sm:$0xff]
        %v235 = vld [vmem:[%s187] sm:$0xff]
        %v236 = vld [vmem:[%s187 + $0x8] sm:$0xff]
        %v237 = vld [vmem:[%s187 + $0x10] sm:$0xff]
        %v238 = vld [vmem:[%s187 + $0x18] sm:$0xff]
        %v239 = vld [vmem:[%s187 + $0x20] sm:$0xff]
        %v240 = vld [vmem:[%s187 + $0x28] sm:$0xff]
        %v241 = vld [vmem:[%s187 + $0x30] sm:$0xff]
        %v242 = vld [vmem:[%s187 + $0x38] sm:$0xff]
        %v243 = vld [vmem:[#allocation6] sm:$0xff]
        %v244 = vld [vmem:[#allocation6 + $0x8] sm:$0xff]
        %v245 = vld [vmem:[#allocation6 + $0x10] sm:$0xff]
        %v246 = vld [vmem:[#allocation6 + $0x18] sm:$0xff]
        %v247 = vld [vmem:[#allocation6 + $0x20] sm:$0xff]
        %v248 = vld [vmem:[#allocation6 + $0x28] sm:$0xff]
        %v249 = vld [vmem:[#allocation6 + $0x30] sm:$0xff]
        %v250 = vld [vmem:[#allocation6 + $0x38] sm:$0xff]
        %v251 = vld [vmem:[#allocation6 + $0x40] sm:$0xff]
        %v252 = vld [vmem:[#allocation6 + $0x48] sm:$0xff]
        %v253 = vld [vmem:[#allocation6 + $0x50] sm:$0xff]
        %v254 = vld [vmem:[#allocation6 + $0x58] sm:$0xff]
        %v255 = vld [vmem:[#allocation6 + $0x60] sm:$0xff]
        %v256 = vld [vmem:[#allocation6 + $0x68] sm:$0xff]
        %v257 = vld [vmem:[#allocation6 + $0x70] sm:$0xff]
        %v258 = vld [vmem:[#allocation6 + $0x78] sm:$0xff]
        %259 = vmatprep.subr.mxu0 0.0
        %260 = vmatpush1.msra.mxu0 %v258
        %261 = vmatprep.subr.mxu0 0.0
        %262 = vmatpush1.msra.mxu0 %v257
        %263 = vmatprep.subr.mxu0 0.0
        %264 = vmatpush1.msra.mxu0 %v256
        %265 = vmatprep.subr.mxu0 0.0
        %266 = vmatpush1.msra.mxu0 %v255
        %267 = vmatprep.subr.mxu0 0.0
        %268 = vmatpush1.msra.mxu0 %v254
        %269 = vmatprep.subr.mxu0 0.0
        %270 = vmatpush1.msra.mxu0 %v253
        %271 = vmatprep.subr.mxu0 0.0
        %272 = vmatpush1.msra.mxu0 %v252
        %273 = vmatprep.subr.mxu0 0.0
        %274 = vmatpush1.msra.mxu0 %v251
        %275 = vmatprep.subr.mxu0 0.0
        %276 = vmatpush1.msra.mxu0 %v250
        %277 = vmatprep.subr.mxu0 0.0
        %278 = vmatpush1.msra.mxu0 %v249
        %279 = vmatprep.subr.mxu0 0.0
        %280 = vmatpush1.msra.mxu0 %v248
        %281 = vmatprep.subr.mxu0 0.0
        %282 = vmatpush1.msra.mxu0 %v247
        %283 = vmatprep.subr.mxu0 0.0
        %284 = vmatpush1.msra.mxu0 %v246
        %285 = vmatprep.subr.mxu0 0.0
        %286 = vmatpush1.msra.mxu0 %v245
        %287 = vmatprep.subr.mxu0 0.0
        %288 = vmatpush1.msra.mxu0 %v244
        %289 = vmatprep.subr.mxu0 0.0
        %290 = vmatpush1.msra.mxu0 %v243
        %291 = vmatprep.subr.mxu0 0.0
        %292 = vmatpush2.msra.mxu0 0.0
        %293 = vmatprep.subr.mxu0 0.0
        %294 = vmatpush2.msra.mxu0 0.0
        %295 = vmatprep.subr.mxu0 0.0
        %296 = vmatpush2.msra.mxu0 0.0
        %297 = vmatprep.subr.mxu0 0.0
        %298 = vmatpush2.msra.mxu0 0.0
        %299 = vmatprep.subr.mxu0 0.0
        %300 = vmatpush2.msra.mxu0 0.0
        %301 = vmatprep.subr.mxu0 0.0
        %302 = vmatpush2.msra.mxu0 0.0
        %303 = vmatprep.subr.mxu0 0.0
        %304 = vmatpush2.msra.mxu0 0.0
        %305 = vmatprep.subr.mxu0 0.0
        %306 = vmatpush2.msra.mxu0 0.0
        %307 = vmatprep.subr.mxu0 0.0
        %308 = vmatpush2.msra.mxu0 0.0
        %309 = vmatprep.subr.mxu0 0.0
        %310 = vmatpush2.msra.mxu0 0.0
        %311 = vmatprep.subr.mxu0 0.0
        %312 = vmatpush2.msra.mxu0 0.0
        %313 = vmatprep.subr.mxu0 0.0
        %314 = vmatpush2.msra.mxu0 0.0
        %315 = vmatprep.subr.mxu0 0.0
        %316 = vmatpush2.msra.mxu0 0.0
        %317 = vmatprep.subr.mxu0 0.0
        %318 = vmatpush2.msra.mxu0 0.0
        %319 = vmatprep.subr.mxu0 0.0
        %320 = vmatpush2.msra.mxu0 0.0
        %321 = vmatprep.subr.mxu0 0.0
        %322 = vmatpush2.msra.mxu0 0.0
        %323 = vmatprep.mubr.f32.mxu0 0.0
        %324 = vmatmul.mubr.f32.gmra.mxu0 %v235
        %v325 = vpop.f32.mrf.mxu0
        %v326 = vadd.f32 0.0, %v325
        %v327 = vpop.f32.mrf.mxu0
        %328 = vmatprep.mubr.f32.mxu0 0.0
        %329 = vmatmul.mubr.f32.gmra.mxu0 %v236
        %v330 = vpop.f32.mrf.mxu0
        %v331 = vadd.f32 0.0, %v330
        %v332 = vpop.f32.mrf.mxu0
        %333 = vmatprep.mubr.f32.mxu0 0.0
        %334 = vmatmul.mubr.f32.gmra.mxu0 %v237
        %v335 = vpop.f32.mrf.mxu0
        %v336 = vadd.f32 0.0, %v335
        %v337 = vpop.f32.mrf.mxu0
        %338 = vmatprep.mubr.f32.mxu0 0.0
        %339 = vmatmul.mubr.f32.gmra.mxu0 %v238
        %v340 = vpop.f32.mrf.mxu0
        %v341 = vadd.f32 0.0, %v340
        %v342 = vpop.f32.mrf.mxu0
        %343 = vmatprep.mubr.f32.mxu0 0.0
        %344 = vmatmul.mubr.f32.gmra.mxu0 %v239
        %v345 = vpop.f32.mrf.mxu0
        %v346 = vadd.f32 0.0, %v345
        %v347 = vpop.f32.mrf.mxu0
        %348 = vmatprep.mubr.f32.mxu0 0.0
        %349 = vmatmul.mubr.f32.gmra.mxu0 %v240
        %v350 = vpop.f32.mrf.mxu0
        %v351 = vadd.f32 0.0, %v350
        %v352 = vpop.f32.mrf.mxu0
        %353 = vmatprep.mubr.f32.mxu0 0.0
        %354 = vmatmul.mubr.f32.gmra.mxu0 %v241
        %v355 = vpop.f32.mrf.mxu0
        %v356 = vadd.f32 0.0, %v355
        %v357 = vpop.f32.mrf.mxu0
        %358 = vmatprep.mubr.f32.mxu0 0.0
        %359 = vmatmul.mubr.f32.gmra.mxu0 %v242
        %v360 = vpop.f32.mrf.mxu0
        %v361 = vadd.f32 0.0, %v360
        %v362 = vpop.f32.mrf.mxu0
        %363 = vdwg.mxu0
        %v364 = vadd.f32 %v227, %v326
        %v365 = vadd.f32 %v228, %v331
        %v366 = vadd.f32 %v229, %v336
        %v367 = vadd.f32 %v230, %v341
        %v368 = vadd.f32 %v231, %v346
        %v369 = vadd.f32 %v232, %v351
        %v370 = vadd.f32 %v233, %v356
        %v371 = vadd.f32 %v234, %v361
        %372 = vst [vmem:[#allocation2] sm:$0xff] %v364
        %373 = vst [vmem:[#allocation2 + $0x8] sm:$0xff] %v365
        %374 = vst [vmem:[#allocation2 + $0x10] sm:$0xff] %v366
        %375 = vst [vmem:[#allocation2 + $0x18] sm:$0xff] %v367
        %376 = vst [vmem:[#allocation2 + $0x20] sm:$0xff] %v368
        %377 = vst [vmem:[#allocation2 + $0x28] sm:$0xff] %v369
        %378 = vst [vmem:[#allocation2 + $0x30] sm:$0xff] %v370
        %379 = vst [vmem:[#allocation2 + $0x38] sm:$0xff] %v371
        // Predicated region
        $region41: #{tpu_custom_call.1} parent=27 // pred_check
          %p380 = pneg %p215
        $region42: #{tpu_custom_call.1} parent=27 // pred_check_branch
          %382 = sbr.rel (%p380) target = $region44
        $region43: #{tpu_custom_call.1} parent=27 // pred_region
          %v383 = vld [vmem:[#allocation2] sm:$0xff]
          %v384 = vld [vmem:[#allocation2 + $0x8] sm:$0xff]
          %v385 = vld [vmem:[#allocation2 + $0x10] sm:$0xff]
          %v386 = vld [vmem:[#allocation2 + $0x18] sm:$0xff]
          %v387 = vld [vmem:[#allocation2 + $0x20] sm:$0xff]
          %v388 = vld [vmem:[#allocation2 + $0x28] sm:$0xff]
          %v389 = vld [vmem:[#allocation2 + $0x30] sm:$0xff]
          %v390 = vld [vmem:[#allocation2 + $0x38] sm:$0xff]
          %391 = vst [vmem:[%s211] sm:$0xff] %v383
          %392 = vst [vmem:[%s211 + $0x8] sm:$0xff] %v384
          %393 = vst [vmem:[%s211 + $0x10] sm:$0xff] %v385
          %394 = vst [vmem:[%s211 + $0x18] sm:$0xff] %v386
          %395 = vst [vmem:[%s211 + $0x20] sm:$0xff] %v387
          %396 = vst [vmem:[%s211 + $0x28] sm:$0xff] %v388
          %397 = vst [vmem:[%s211 + $0x30] sm:$0xff] %v389
          %398 = vst [vmem:[%s211 + $0x38] sm:$0xff] %v390
        $region44: #{tpu_custom_call.1} parent=27 // pred_fallthru
          _
        %s399 = sand.u32 %s105, 1
        %s400 = scalar_lea.sflag [#allocation5], %s399
        %s401 = sand.u32 %s105, 1
        %s402 = smul.addr %s401, 64
        %s403 = scalar_lea.vmem [#allocation8], %s402
        // Predicated region
        $region45: #{tpu_custom_call.1} parent=27 // pred_check
          %p404 = pneg %p115
        $region46: #{tpu_custom_call.1} parent=27 // pred_check_branch
          %406 = sbr.rel (%p404) target = $region48
        $region47: #{tpu_custom_call.1} parent=27 // pred_region
          %s407 = smul.u32 8, %s25
          %s409 = ssub.s32 1024, 1024
          %410 = vsyncadd %s400, %s409
          %s411 = sadd.s32 %s26, %s407
          %s412 = smul.addr %s411, 128
          %s413 = scalar_lea.hbm %s2, %s412
          %s414 = sshll.u32 %s403, 4
          %s415 = int_to_ptr.vmem [resolvable:$true] %s414
          %420 = dma.vmem_to_hbm [thread:$0]  %s415, 1024, %s413, %s400, 128, 128, 8
        $region48: #{tpu_custom_call.1} parent=27 // pred_fallthru
          _
      $region28: #{tpu_custom_call.1} parent=5 // pred_fallthru
        _
      %p421 = scmp.le.s32.totalorder 2, %s15
      // Predicated region
      $region49: #{tpu_custom_call.1} parent=5 // pred_check
        %p422 = pneg %p421
      $region50: #{tpu_custom_call.1} parent=5 // pred_check_branch
        %424 = sbr.rel (%p422) target = $region52
      $region51: #{tpu_custom_call.1} parent=5 // pred_region
        %s425 = ssub.s32 %s15, 2
        // Predicated region
        $region53: #{tpu_custom_call.1} parent=51 // pred_check
          %p426 = pneg %p121
        $region54: #{tpu_custom_call.1} parent=51 // pred_check_branch
          %428 = sbr.rel (%p426) target = $region56
        $region55: #{tpu_custom_call.1} parent=51 // pred_region
          %s429 = sand.u32 %s106, 1
          %s430 = scalar_lea.sflag [#allocation5], %s429
          %s431 = sand.u32 %s106, 1
          %s432 = smul.addr %s431, 64
          %s433 = scalar_lea.vmem [#allocation8], %s432
          %434 = dma.done %s430, 1024
        $region56: #{tpu_custom_call.1} parent=51 // pred_fallthru
          _
      $region52: #{tpu_custom_call.1} parent=5 // pred_fallthru
        _
    $region6: #{tpu_custom_call.1} parent=1 // loop_footer
      %s19 = sadd.s32 1, %s15
    $region7: #{tpu_custom_call.1} parent=1 // loop_footer_branch
      %14 = sbr.rel target = $region3
    $region8: #{tpu_custom_call.1} parent=1 // loop_exit
      _
    %435 = vsyncpa [#allocation4], 1
    %s436 = scalar_lea.sflag [#allocation4], 1
    %437 = vsyncpa %s436, 1
    %438 = vsyncpa [#allocation7], 1
    %439 = vsyncpa [#allocation5], 1
    %s440 = scalar_lea.sflag [#allocation5], 1
    %441 = vsyncpa %s440, 1

</llo_original>
